<compile_context>
chip_gen: v7x
topology: tpu7x:2x2x1
jax: 0.10.0
libtpu: 0.0.40
codegen_flags: <defaults>
</compile_context>

<pallas_src>
import jax
import jax.numpy as jnp
from jax.experimental import pallas as pl
from jax.experimental.pallas import tpu as pltpu

D_IN = 768
D_HID = 50
MAX_TB = 4096   # f32 x tile = 4096*768*4 B = 12 MiB; x2 buffers = 24 MiB


def _round_up(n, m):
    return ((n + m - 1) // m) * m


def _mlp_kernel(x_ref, w1_ref, b1_ref, w2_ref, b2_ref, o_ref):
    # fc1: f32 x f32 on the MXU, f32 accumulate; bias + ReLU on the VPU.
    h = jnp.dot(x_ref[...], w1_ref[...], preferred_element_type=jnp.float32)
    h = jnp.maximum(h + b1_ref[...], 0.0)                    # (TB, 50)
    # fc2: K=50, N=1 -> VPU multiply + lane reduction (skip the lane-sparse MXU).
    y = jnp.sum(h * w2_ref[...], axis=-1, keepdims=True)     # (TB, 1)
    y = y + b2_ref[0, 0]                                     # scalar bias (SMEM)
    o_ref[...] = jax.nn.sigmoid(y)


def sentiment_classifier_forward(x, w1, b1, w2, b2):
    """x: (B, 768) f32; w1: (768, 50); b1: (1, 50); w2: (50, 1); b2: (1, 1)."""
    B = x.shape[0]
    x = x.astype(jnp.float32)          # no-op for f32 inputs

    # Batch tile: >= 2 grid steps when B allows it (v7x megacore), multiple of
    # 8 sublanes, capped so the f32 double-buffered x tile fits VMEM everywhere.
    TB = min(MAX_TB, _round_up(pl.cdiv(B, 2), 8))
    num_blocks = pl.cdiv(B, TB)        # ragged last block is masked by Pallas

    w1_f = w1.astype(jnp.float32)
    b1_f = b1.astype(jnp.float32).reshape(1, D_HID)
    w2_row = w2.astype(jnp.float32).reshape(1, D_HID)   # lane-major row for the VPU
    b2_s = b2.astype(jnp.float32).reshape(1, 1)

    # VMEM budget: double-buffered x tile dominates; leave physical headroom.
    vmem_need = (2 * TB * D_IN * 4 + 2 * TB * 4
                 + 2 * (D_IN * D_HID + 3 * D_HID + 1) * 4)
    vmem_limit = max(8 << 20, min(vmem_need + (4 << 20), 40 << 20))

    out = pl.pallas_call(
        _mlp_kernel,
        out_shape=jax.ShapeDtypeStruct((B, 1), jnp.float32),
        grid=(num_blocks,),
        in_specs=[
            pl.BlockSpec((TB, D_IN), lambda i: (i, 0)),         # x: tiled, pipelined
            pl.BlockSpec((D_IN, D_HID), lambda i: (0, 0)),      # w1: resident
            pl.BlockSpec((1, D_HID), lambda i: (0, 0)),         # b1: resident
            pl.BlockSpec((1, D_HID), lambda i: (0, 0)),         # w2 row: resident
            pl.BlockSpec(memory_space=pltpu.MemorySpace.SMEM),  # b2: SMEM scalar
        ],
        out_specs=pl.BlockSpec((TB, 1), lambda i: (i, 0)),
        compiler_params=pltpu.CompilerParams(
            dimension_semantics=("parallel",),
            vmem_limit_bytes=vmem_limit,
        ),
    )(x, w1_f, b1_f, w2_row, b2_s)

    return out


def init_params(key):
    """Deterministic init mimicking nn.Linear default (uniform(-1/sqrt(fan_in), ...))."""
    k1, k2, k3, k4 = jax.random.split(key, 4)
    bound1 = 1.0 / jnp.sqrt(float(D_IN))
    bound2 = 1.0 / jnp.sqrt(float(D_HID))
    w1 = jax.random.uniform(k1, (D_IN, D_HID), jnp.float32, -bound1, bound1)
    b1 = jax.random.uniform(k2, (1, D_HID), jnp.float32, -bound1, bound1)
    w2 = jax.random.uniform(k3, (D_HID, 1), jnp.float32, -bound2, bound2)
    b2 = jax.random.uniform(k4, (1, 1), jnp.float32, -bound2, bound2)
    return w1, b1, w2, b2


if __name__ == "__main__":
    key = jax.random.PRNGKey(0)
    kx, kx2, kp = jax.random.split(key, 3)

    w1, b1, w2, b2 = init_params(kp)

    def ref_forward(xx):
        return jax.nn.sigmoid(jnp.maximum(xx @ w1 + b1, 0.0) @ w2 + b2)

    # Small batch (B=2): exercises a single ragged block (TB=8 > B).
    B = 2
    x = jax.random.normal(kx, (B, D_IN), jnp.float32)
    out = sentiment_classifier_forward(x, w1, b1, w2, b2)
    jax.block_until_ready(out)
    assert out.shape == (B, 1)
    ref = ref_forward(x)
    # Tolerance covers MXU default-precision fc1 vs XLA reference.
    assert jnp.allclose(out, ref, atol=2e-3, rtol=2e-3), (
        f"max abs err {jnp.max(jnp.abs(out - ref))}")

    # Batch that is not a multiple of the tile size (ragged last block + 2 grid steps).
    B2 = 37
    x2 = jax.random.normal(kx2, (B2, D_IN), jnp.float32)
    out2 = sentiment_classifier_forward(x2, w1, b1, w2, b2)
    jax.block_until_ready(out2)
    assert out2.shape == (B2, 1)
    ref2 = ref_forward(x2)
    assert jnp.allclose(out2, ref2, atol=2e-3, rtol=2e-3), (
        f"max abs err {jnp.max(jnp.abs(out2 - ref2))}")

    print("KERNEL_OK")
</pallas_src>

<mosaic_0001>
module attributes {stable_mosaic.version = 11 : i64} {
  func.func @_mlp_kernel(%arg0: i32, %arg1: memref<8x768xf32, #tpu.memory_space<vmem>>, %arg2: memref<768x50xf32, #tpu.memory_space<vmem>>, %arg3: memref<1x50xf32, #tpu.memory_space<vmem>>, %arg4: memref<1x50xf32, #tpu.memory_space<vmem>>, %arg5: memref<1x1xf32, #tpu.memory_space<smem>>, %arg6: memref<8x1xf32, #tpu.memory_space<vmem>>) attributes {dimension_semantics = [#tpu.dimension_semantics<parallel>], iteration_bounds = array<i64: 1>, scalar_prefetch = 0 : i64, scratch_operands = 0 : i64, tpu.core_type = #tpu.core_type<tc>, window_params = [{transform_indices = @transform_0, window_bounds = array<i64: 8, 768>}, {pipeline_mode = #tpu.pipeline_mode<synchronous>, transform_indices = @transform_1, window_bounds = array<i64: 768, 50>}, {pipeline_mode = #tpu.pipeline_mode<synchronous>, transform_indices = @transform_2, window_bounds = array<i64: 1, 50>}, {pipeline_mode = #tpu.pipeline_mode<synchronous>, transform_indices = @transform_3, window_bounds = array<i64: 1, 50>}, {transform_indices = @transform_4, window_bounds = array<i64: 1, 1>}, {transform_indices = @transform_5, window_bounds = array<i64: 8, 1>}]} {
    %c0 = arith.constant 0 : index
    %c0_0 = arith.constant 0 : index
    %0 = vector.load %arg1[%c0, %c0_0] : memref<8x768xf32, #tpu.memory_space<vmem>>, vector<8x768xf32>
    %c0_1 = arith.constant 0 : index
    %c0_2 = arith.constant 0 : index
    %1 = vector.load %arg2[%c0_1, %c0_2] : memref<768x50xf32, #tpu.memory_space<vmem>>, vector<768x50xf32>
    %cst = arith.constant dense<0.000000e+00> : vector<8x50xf32>
    %2 = tpu.matmul %0, %1, %cst {dimension_numbers = #tpu.dot_dimension_numbers<[1], [0], [0], [1], [0, 0, 1, 1], [], []>} : vector<8x768xf32>, vector<768x50xf32>, vector<8x50xf32> -> vector<8x50xf32>
    %c0_3 = arith.constant 0 : index
    %c0_4 = arith.constant 0 : index
    %3 = vector.load %arg3[%c0_3, %c0_4] : memref<1x50xf32, #tpu.memory_space<vmem>>, vector<1x50xf32>
    %4 = vector.broadcast %3 : vector<1x50xf32> to vector<8x50xf32>
    %5 = arith.addf %2, %4 : vector<8x50xf32>
    %cst_5 = arith.constant 0.000000e+00 : f32
    %6 = vector.broadcast %cst_5 : f32 to vector<8x50xf32>
    %7 = arith.maximumf %5, %6 : vector<8x50xf32>
    %c0_6 = arith.constant 0 : index
    %c0_7 = arith.constant 0 : index
    %8 = vector.load %arg4[%c0_6, %c0_7] : memref<1x50xf32, #tpu.memory_space<vmem>>, vector<1x50xf32>
    %9 = vector.broadcast %8 : vector<1x50xf32> to vector<8x50xf32>
    %10 = arith.mulf %7, %9 : vector<8x50xf32>
    %cst_8 = arith.constant dense<0.000000e+00> : vector<8xf32>
    %11 = vector.multi_reduction <add>, %10, %cst_8 [1] : vector<8x50xf32> to vector<8xf32>
    %12 = vector.shape_cast %11 : vector<8xf32> to vector<8x1xf32>
    %c0_9 = arith.constant 0 : index
    %c0_10 = arith.constant 0 : index
    %13 = memref.load %arg5[%c0_9, %c0_10] : memref<1x1xf32, #tpu.memory_space<smem>>
    %14 = vector.broadcast %13 : f32 to vector<8x1xf32>
    %15 = arith.addf %12, %14 : vector<8x1xf32>
    %16 = arith.negf %15 : vector<8x1xf32>
    %17 = math.exp %16 : vector<8x1xf32>
    %cst_11 = arith.constant 1.000000e+00 : f32
    %18 = vector.broadcast %cst_11 : f32 to vector<8x1xf32>
    %19 = arith.addf %18, %17 : vector<8x1xf32>
    %20 = arith.divf %18, %19 : vector<8x1xf32>
    %c0_12 = arith.constant 0 : index
    %c0_13 = arith.constant 0 : index
    %21 = vector.load %arg6[%c0_12, %c0_13] : memref<8x1xf32, #tpu.memory_space<vmem>>, vector<8x1xf32>
    tpu.vector_store %arg6[%c0_12, %c0_13], %20 {strides = array<i32>} : memref<8x1xf32, #tpu.memory_space<vmem>>, vector<8x1xf32>,
    return
  }
  func.func @transform_0(%arg0: i32) -> (i32, i32) {
    %c0_i32 = arith.constant 0 : i32
    %c0_i32_0 = arith.constant 0 : i32
    return %arg0, %c0_i32 : i32, i32
  }
  func.func @transform_1(%arg0: i32) -> (i32, i32) {
    %c0_i32 = arith.constant 0 : i32
    %c0_i32_0 = arith.constant 0 : i32
    %c0_i32_1 = arith.constant 0 : i32
    return %c0_i32, %c0_i32_0 : i32, i32
  }
  func.func @transform_2(%arg0: i32) -> (i32, i32) {
    %c0_i32 = arith.constant 0 : i32
    %c0_i32_0 = arith.constant 0 : i32
    %c0_i32_1 = arith.constant 0 : i32
    return %c0_i32, %c0_i32_0 : i32, i32
  }
  func.func @transform_3(%arg0: i32) -> (i32, i32) {
    %c0_i32 = arith.constant 0 : i32
    %c0_i32_0 = arith.constant 0 : i32
    %c0_i32_1 = arith.constant 0 : i32
    return %c0_i32, %c0_i32_0 : i32, i32
  }
  func.func @transform_4(%arg0: i32) -> (i32, i32) {
    %c0_i32 = arith.constant 0 : i32
    %c0_i32_0 = arith.constant 0 : i32
    %c0_i32_1 = arith.constant 0 : i32
    return %c0_i32, %c0_i32_0 : i32, i32
  }
  func.func @transform_5(%arg0: i32) -> (i32, i32) {
    %c0_i32 = arith.constant 0 : i32
    %c0_i32_0 = arith.constant 0 : i32
    return %arg0, %c0_i32 : i32, i32
  }
}

</mosaic_0001>

<llo_original>
// kernel: tpu_custom_call.1
$region0: #{tpu_custom_call.1}
  #allocation0 [shape = 'u32[]', space=smem, size = 0x4, offset = 0x4, fixed_abs, tag = 'smem constant byte address 0x4 - core index']
  #allocation1 [shape = 'u32[144,128]{1,0:T(1,128)}', space=vmem, size = 0x12000, scoped, tag = 'internal scratch']
  #allocation2 [shape = 'f32[1,1]{1,0:T(1,128)S(6)}', space=smem, size = 0x200, scoped, tag = 'scoped memory for tpu_custom_call.1']
  %s0 = inlined_call_operand.vmem [shape: f32[2,768], index: 0, kind: input, shape index: {}]
  %s1 = inlined_call_operand.vmem [shape: f32[768,50], index: 1, kind: input, shape index: {}]
  %s2 = inlined_call_operand.vmem [shape: f32[1,50], index: 2, kind: input, shape index: {}]
  %s3 = inlined_call_operand.vmem [shape: f32[1,50], index: 3, kind: input, shape index: {}]
  %s4 = inlined_call_operand.<no memory space> [shape: f32[1,1], index: 4, kind: input, shape index: {}]
  %s5 = inlined_call_operand.vmem [shape: f32[2,1], index: 5, kind: output, shape index: {}]
  %s6 = sld [smem:[#allocation0]]
  $region60: #{tpu_custom_call.1} parent=0
    _
  %s8 = ssub.s32 1, %s6
  %s9 = scalar_select 0, %s8, %s6
  %10 = sst [smem:[#allocation2]] %s4
  $region1: #{tpu_custom_call.1} parent=0
    #allocation3 [shape = 'u8[4096]{0}', space=vmem, size = 0x1000, scoped, tag = 'output window, operand 0, single buffered']
    // Predicated region
    $region2: #{tpu_custom_call.1} parent=1 // pred_check
      _
    $region3: #{tpu_custom_call.1} parent=1 // pred_check_branch
      %12 = sbr.rel (0) target = $region5
    $region4: #{tpu_custom_call.1} parent=1 // pred_region
      _
    $region5: #{tpu_custom_call.1} parent=1 // pred_fallthru
      _
    // Predicated region
    $region6: #{tpu_custom_call.1} parent=1 // pred_check
      _
    $region7: #{tpu_custom_call.1} parent=1 // pred_check_branch
      %14 = sbr.rel (0) target = $region9
    $region8: #{tpu_custom_call.1} parent=1 // pred_region
      _
    $region9: #{tpu_custom_call.1} parent=1 // pred_fallthru
      _
    // Predicated region
    $region10: #{tpu_custom_call.1} parent=1 // pred_check
      _
    $region11: #{tpu_custom_call.1} parent=1 // pred_check_branch
      %16 = sbr.rel (0) target = $region13
    $region12: #{tpu_custom_call.1} parent=1 // pred_region
      _
    $region13: #{tpu_custom_call.1} parent=1 // pred_fallthru
      _
    // Predicated region
    $region14: #{tpu_custom_call.1} parent=1 // pred_check
      _
    $region15: #{tpu_custom_call.1} parent=1 // pred_check_branch
      %18 = sbr.rel (0) target = $region17
    $region16: #{tpu_custom_call.1} parent=1 // pred_region
      _
    $region17: #{tpu_custom_call.1} parent=1 // pred_fallthru
      _
    // Predicated region
    $region18: #{tpu_custom_call.1} parent=1 // pred_check
      _
    $region19: #{tpu_custom_call.1} parent=1 // pred_check_branch
      %20 = sbr.rel (0) target = $region21
    $region20: #{tpu_custom_call.1} parent=1 // pred_region
      _
    $region21: #{tpu_custom_call.1} parent=1 // pred_fallthru
      _
    %v21 = vld [vmem:[%s0] sm:$0xff]
    %v22 = vld [vmem:[%s0 + $0x8] sm:$0xf]
    %v23 = vld [vmem:[%s0 + $0xc] sm:$0xff]
    %v24 = vld [vmem:[%s0 + $0x14] sm:$0xf]
    %v25 = vld [vmem:[%s0 + $0x18] sm:$0xff]
    %v26 = vld [vmem:[%s0 + $0x20] sm:$0xf]
    %v27 = vld [vmem:[%s0 + $0x24] sm:$0xff]
    %v28 = vld [vmem:[%s0 + $0x2c] sm:$0xf]
    %v29 = vld [vmem:[%s1] sm:$0xff]
    %v30 = vld [vmem:[%s1 + $0x8] sm:$0xff]
    %v31 = vld [vmem:[%s1 + $0x10] sm:$0xff]
    %v32 = vld [vmem:[%s1 + $0x18] sm:$0xff]
    %v33 = vld [vmem:[%s1 + $0x20] sm:$0xff]
    %v34 = vld [vmem:[%s1 + $0x28] sm:$0xff]
    %v35 = vld [vmem:[%s1 + $0x30] sm:$0xff]
    %v36 = vld [vmem:[%s1 + $0x38] sm:$0xff]
    %v37 = vld [vmem:[%s1 + $0x40] sm:$0xff]
    %v38 = vld [vmem:[%s1 + $0x48] sm:$0xff]
    %v39 = vld [vmem:[%s1 + $0x50] sm:$0xff]
    %v40 = vld [vmem:[%s1 + $0x58] sm:$0xff]
    %v41 = vld [vmem:[%s1 + $0x60] sm:$0xff]
    %v42 = vld [vmem:[%s1 + $0x68] sm:$0xff]
    %v43 = vld [vmem:[%s1 + $0x70] sm:$0xff]
    %v44 = vld [vmem:[%s1 + $0x78] sm:$0xff]
    %v45 = vld [vmem:[%s1 + $0x80] sm:$0xff]
    %v46 = vld [vmem:[%s1 + $0x88] sm:$0xff]
    %v47 = vld [vmem:[%s1 + $0x90] sm:$0xff]
    %v48 = vld [vmem:[%s1 + $0x98] sm:$0xff]
    %v49 = vld [vmem:[%s1 + $0xa0] sm:$0xff]
    %v50 = vld [vmem:[%s1 + $0xa8] sm:$0xff]
    %v51 = vld [vmem:[%s1 + $0xb0] sm:$0xff]
    %v52 = vld [vmem:[%s1 + $0xb8] sm:$0xff]
    %v53 = vld [vmem:[%s1 + $0xc0] sm:$0xff]
    %v54 = vld [vmem:[%s1 + $0xc8] sm:$0xff]
    %v55 = vld [vmem:[%s1 + $0xd0] sm:$0xff]
    %v56 = vld [vmem:[%s1 + $0xd8] sm:$0xff]
    %v57 = vld [vmem:[%s1 + $0xe0] sm:$0xff]
    %v58 = vld [vmem:[%s1 + $0xe8] sm:$0xff]
    %v59 = vld [vmem:[%s1 + $0xf0] sm:$0xff]
    %v60 = vld [vmem:[%s1 + $0xf8] sm:$0xff]
    %v61 = vld [vmem:[%s1 + $0x100] sm:$0xff]
    %v62 = vld [vmem:[%s1 + $0x108] sm:$0xff]
    %v63 = vld [vmem:[%s1 + $0x110] sm:$0xff]
    %v64 = vld [vmem:[%s1 + $0x118] sm:$0xff]
    %v65 = vld [vmem:[%s1 + $0x120] sm:$0xff]
    %v66 = vld [vmem:[%s1 + $0x128] sm:$0xff]
    %v67 = vld [vmem:[%s1 + $0x130] sm:$0xff]
    %v68 = vld [vmem:[%s1 + $0x138] sm:$0xff]
    %v69 = vld [vmem:[%s1 + $0x140] sm:$0xff]
    %v70 = vld [vmem:[%s1 + $0x148] sm:$0xff]
    %v71 = vld [vmem:[%s1 + $0x150] sm:$0xff]
    %v72 = vld [vmem:[%s1 + $0x158] sm:$0xff]
    %v73 = vld [vmem:[%s1 + $0x160] sm:$0xff]
    %v74 = vld [vmem:[%s1 + $0x168] sm:$0xff]
    %v75 = vld [vmem:[%s1 + $0x170] sm:$0xff]
    %v76 = vld [vmem:[%s1 + $0x178] sm:$0xff]
    %v77 = vld [vmem:[%s1 + $0x180] sm:$0xff]
    %v78 = vld [vmem:[%s1 + $0x188] sm:$0xff]
    %v79 = vld [vmem:[%s1 + $0x190] sm:$0xff]
    %v80 = vld [vmem:[%s1 + $0x198] sm:$0xff]
    %v81 = vld [vmem:[%s1 + $0x1a0] sm:$0xff]
    %v82 = vld [vmem:[%s1 + $0x1a8] sm:$0xff]
    %v83 = vld [vmem:[%s1 + $0x1b0] sm:$0xff]
    %v84 = vld [vmem:[%s1 + $0x1b8] sm:$0xff]
    %v85 = vld [vmem:[%s1 + $0x1c0] sm:$0xff]
    %v86 = vld [vmem:[%s1 + $0x1c8] sm:$0xff]
    %v87 = vld [vmem:[%s1 + $0x1d0] sm:$0xff]
    %v88 = vld [vmem:[%s1 + $0x1d8] sm:$0xff]
    %v89 = vld [vmem:[%s1 + $0x1e0] sm:$0xff]
    %v90 = vld [vmem:[%s1 + $0x1e8] sm:$0xff]
    %v91 = vld [vmem:[%s1 + $0x1f0] sm:$0xff]
    %v92 = vld [vmem:[%s1 + $0x1f8] sm:$0xff]
    %v93 = vld [vmem:[%s1 + $0x200] sm:$0xff]
    %v94 = vld [vmem:[%s1 + $0x208] sm:$0xff]
    %v95 = vld [vmem:[%s1 + $0x210] sm:$0xff]
    %v96 = vld [vmem:[%s1 + $0x218] sm:$0xff]
    %v97 = vld [vmem:[%s1 + $0x220] sm:$0xff]
    %v98 = vld [vmem:[%s1 + $0x228] sm:$0xff]
    %v99 = vld [vmem:[%s1 + $0x230] sm:$0xff]
    %v100 = vld [vmem:[%s1 + $0x238] sm:$0xff]
    %v101 = vld [vmem:[%s1 + $0x240] sm:$0xff]
    %v102 = vld [vmem:[%s1 + $0x248] sm:$0xff]
    %v103 = vld [vmem:[%s1 + $0x250] sm:$0xff]
    %v104 = vld [vmem:[%s1 + $0x258] sm:$0xff]
    %v105 = vld [vmem:[%s1 + $0x260] sm:$0xff]
    %v106 = vld [vmem:[%s1 + $0x268] sm:$0xff]
    %v107 = vld [vmem:[%s1 + $0x270] sm:$0xff]
    %v108 = vld [vmem:[%s1 + $0x278] sm:$0xff]
    %v109 = vld [vmem:[%s1 + $0x280] sm:$0xff]
    %v110 = vld [vmem:[%s1 + $0x288] sm:$0xff]
    %v111 = vld [vmem:[%s1 + $0x290] sm:$0xff]
    %v112 = vld [vmem:[%s1 + $0x298] sm:$0xff]
    %v113 = vld [vmem:[%s1 + $0x2a0] sm:$0xff]
    %v114 = vld [vmem:[%s1 + $0x2a8] sm:$0xff]
    %v115 = vld [vmem:[%s1 + $0x2b0] sm:$0xff]
    %v116 = vld [vmem:[%s1 + $0x2b8] sm:$0xff]
    %v117 = vld [vmem:[%s1 + $0x2c0] sm:$0xff]
    %v118 = vld [vmem:[%s1 + $0x2c8] sm:$0xff]
    %v119 = vld [vmem:[%s1 + $0x2d0] sm:$0xff]
    %v120 = vld [vmem:[%s1 + $0x2d8] sm:$0xff]
    %v121 = vld [vmem:[%s1 + $0x2e0] sm:$0xff]
    %v122 = vld [vmem:[%s1 + $0x2e8] sm:$0xff]
    %v123 = vld [vmem:[%s1 + $0x2f0] sm:$0xff]
    %v124 = vld [vmem:[%s1 + $0x2f8] sm:$0xff]
    %v125 = vld [vmem:[%s2] sm:$0x1]
    %v127 = vlaneseq
    %v128 = vshrl.u32 %v127, 7
    %v129 = vsub.s32 0, %v128
    %v130 = vrot.slane %v125, %v129
    %v140 = vcombine.low %v21, %v23
    %v141 = vcombine.high %v21, %v23
    %v142 = vcombine.low %v25, %v27
    %v143 = vcombine.high %v25, %v27
    %v145 = vunpack.c.l.s4 1983009808
    %v146 = vunpack.c.0.s8 %v145
    %v147 = vlaneseq
    %v148 = vshrl.u32 %v147, 7
    %v149 = vsub.s32 %v146, %v148
    %v150 = vrot.slane %v140, %v149
    %v152 = vunpack.c.l.s4 1983009808
    %v153 = vunpack.c.0.s8 %v152
    %v154 = vlaneseq
    %v155 = vshrl.u32 %v154, 7
    %v156 = vsub.s32 %v153, %v155
    %v157 = vrot.slane %v141, %v156
    %v159 = vunpack.c.l.s4 1983009808
    %v160 = vunpack.c.0.s8 %v159
    %v161 = vlaneseq
    %v162 = vshrl.u32 %v161, 7
    %v163 = vsub.s32 %v160, %v162
    %v164 = vrot.slane %v142, %v163
    %v166 = vunpack.c.l.s4 1983009808
    %v167 = vunpack.c.0.s8 %v166
    %v168 = vlaneseq
    %v169 = vshrl.u32 %v168, 7
    %v170 = vsub.s32 %v167, %v169
    %v171 = vrot.slane %v143, %v170
    %v172 = vcombine.low %v150, %v164
    %v173 = vcombine.high %v150, %v164
    %v174 = vcombine.low %v157, %v171
    %v175 = vcombine.high %v157, %v171
    %v176 = vcombine.low %v22, %v24
    %v177 = vcombine.low %v26, %v28
    %v179 = vunpack.c.l.s4 1983009808
    %v180 = vunpack.c.0.s8 %v179
    %v181 = vlaneseq
    %v182 = vshrl.u32 %v181, 7
    %v183 = vsub.s32 %v180, %v182
    %v184 = vrot.slane %v176, %v183
    %v186 = vunpack.c.l.s4 1983009808
    %v187 = vunpack.c.0.s8 %v186
    %v188 = vlaneseq
    %v189 = vshrl.u32 %v188, 7
    %v190 = vsub.s32 %v187, %v189
    %v191 = vrot.slane %v177, %v190
    %v192 = vcombine.low %v184, %v191
    %v193 = vcombine.high %v184, %v191
    %200 = vmatprep.subr.mxu0 0.0
    %201 = vmatpush1.msra.mxu0 %v29
    %202 = vmatprep.subr.mxu0 0.0
    %203 = vmatpush1.msra.mxu0 %v30
    %204 = vmatprep.subr.mxu0 0.0
    %205 = vmatpush1.msra.mxu0 %v31
    %206 = vmatprep.subr.mxu0 0.0
    %207 = vmatpush1.msra.mxu0 %v32
    %208 = vmatprep.subr.mxu0 0.0
    %209 = vmatpush1.msra.mxu0 %v33
    %210 = vmatprep.subr.mxu0 0.0
    %211 = vmatpush1.msra.mxu0 %v34
    %212 = vmatprep.subr.mxu0 0.0
    %213 = vmatpush1.msra.mxu0 %v35
    %214 = vmatprep.subr.mxu0 0.0
    %215 = vmatpush1.msra.mxu0 %v36
    %216 = vmatprep.subr.mxu0 0.0
    %217 = vmatpush1.msra.mxu0 %v37
    %218 = vmatprep.subr.mxu0 0.0
    %219 = vmatpush1.msra.mxu0 %v38
    %220 = vmatprep.subr.mxu0 0.0
    %221 = vmatpush1.msra.mxu0 %v39
    %222 = vmatprep.subr.mxu0 0.0
    %223 = vmatpush1.msra.mxu0 %v40
    %224 = vmatprep.subr.mxu0 0.0
    %225 = vmatpush1.msra.mxu0 %v41
    %226 = vmatprep.subr.mxu0 0.0
    %227 = vmatpush1.msra.mxu0 %v42
    %228 = vmatprep.subr.mxu0 0.0
    %229 = vmatpush1.msra.mxu0 %v43
    %230 = vmatprep.subr.mxu0 0.0
    %231 = vmatpush1.msra.mxu0 %v44
    %232 = vmatprep.subr.mxu0 0.0
    %233 = vmatpush1.msra.mxu0 %v45
    %234 = vmatprep.subr.mxu0 0.0
    %235 = vmatpush1.msra.mxu0 %v46
    %236 = vmatprep.subr.mxu0 0.0
    %237 = vmatpush1.msra.mxu0 %v47
    %238 = vmatprep.subr.mxu0 0.0
    %239 = vmatpush1.msra.mxu0 %v48
    %240 = vmatprep.subr.mxu0 0.0
    %241 = vmatpush1.msra.mxu0 %v49
    %242 = vmatprep.subr.mxu0 0.0
    %243 = vmatpush1.msra.mxu0 %v50
    %244 = vmatprep.subr.mxu0 0.0
    %245 = vmatpush1.msra.mxu0 %v51
    %246 = vmatprep.subr.mxu0 0.0
    %247 = vmatpush1.msra.mxu0 %v52
    %248 = vmatprep.subr.mxu0 0.0
    %249 = vmatpush1.msra.mxu0 %v53
    %250 = vmatprep.subr.mxu0 0.0
    %251 = vmatpush1.msra.mxu0 %v54
    %252 = vmatprep.subr.mxu0 0.0
    %253 = vmatpush1.msra.mxu0 %v55
    %254 = vmatprep.subr.mxu0 0.0
    %255 = vmatpush1.msra.mxu0 %v56
    %256 = vmatprep.subr.mxu0 0.0
    %257 = vmatpush1.msra.mxu0 %v57
    %258 = vmatprep.subr.mxu0 0.0
    %259 = vmatpush1.msra.mxu0 %v58
    %260 = vmatprep.subr.mxu0 0.0
    %261 = vmatpush1.msra.mxu0 %v59
    %262 = vmatprep.subr.mxu0 0.0
    %263 = vmatpush1.msra.mxu0 %v60
    %264 = vmatprep.mubr.f32.mxu0 %v173
    %265 = vmatmul.mubr.f32.gmra.mrb[0].mxu0 %v172
    %v266 = vpop.f32.mrb[0].mxu0
    %v267 = vadd.f32 %v130, %v266
    %v268 = vpop.f32.mrb[0].mxu0
    %269 = vdwg.mxu0
    %270 = vmatprep.subr.mxu0 0.0
    %271 = vmatpush1.msra.mxu0 %v61
    %272 = vmatprep.subr.mxu0 0.0
    %273 = vmatpush1.msra.mxu0 %v62
    %274 = vmatprep.subr.mxu0 0.0
    %275 = vmatpush1.msra.mxu0 %v63
    %276 = vmatprep.subr.mxu0 0.0
    %277 = vmatpush1.msra.mxu0 %v64
    %278 = vmatprep.subr.mxu0 0.0
    %279 = vmatpush1.msra.mxu0 %v65
    %280 = vmatprep.subr.mxu0 0.0
    %281 = vmatpush1.msra.mxu0 %v66
    %282 = vmatprep.subr.mxu0 0.0
    %283 = vmatpush1.msra.mxu0 %v67
    %284 = vmatprep.subr.mxu0 0.0
    %285 = vmatpush1.msra.mxu0 %v68
    %286 = vmatprep.subr.mxu0 0.0
    %287 = vmatpush1.msra.mxu0 %v69
    %288 = vmatprep.subr.mxu0 0.0
    %289 = vmatpush1.msra.mxu0 %v70
    %290 = vmatprep.subr.mxu0 0.0
    %291 = vmatpush1.msra.mxu0 %v71
    %292 = vmatprep.subr.mxu0 0.0
    %293 = vmatpush1.msra.mxu0 %v72
    %294 = vmatprep.subr.mxu0 0.0
    %295 = vmatpush1.msra.mxu0 %v73
    %296 = vmatprep.subr.mxu0 0.0
    %297 = vmatpush1.msra.mxu0 %v74
    %298 = vmatprep.subr.mxu0 0.0
    %299 = vmatpush1.msra.mxu0 %v75
    %300 = vmatprep.subr.mxu0 0.0
    %301 = vmatpush1.msra.mxu0 %v76
    %302 = vmatprep.subr.mxu0 0.0
    %303 = vmatpush1.msra.mxu0 %v77
    %304 = vmatprep.subr.mxu0 0.0
    %305 = vmatpush1.msra.mxu0 %v78
    %306 = vmatprep.subr.mxu0 0.0
    %307 = vmatpush1.msra.mxu0 %v79
    %308 = vmatprep.subr.mxu0 0.0
    %309 = vmatpush1.msra.mxu0 %v80
    %310 = vmatprep.subr.mxu0 0.0
    %311 = vmatpush1.msra.mxu0 %v81
    %312 = vmatprep.subr.mxu0 0.0
    %313 = vmatpush1.msra.mxu0 %v82
    %314 = vmatprep.subr.mxu0 0.0
    %315 = vmatpush1.msra.mxu0 %v83
    %316 = vmatprep.subr.mxu0 0.0
    %317 = vmatpush1.msra.mxu0 %v84
    %318 = vmatprep.subr.mxu0 0.0
    %319 = vmatpush1.msra.mxu0 %v85
    %320 = vmatprep.subr.mxu0 0.0
    %321 = vmatpush1.msra.mxu0 %v86
    %322 = vmatprep.subr.mxu0 0.0
    %323 = vmatpush1.msra.mxu0 %v87
    %324 = vmatprep.subr.mxu0 0.0
    %325 = vmatpush1.msra.mxu0 %v88
    %326 = vmatprep.subr.mxu0 0.0
    %327 = vmatpush1.msra.mxu0 %v89
    %328 = vmatprep.subr.mxu0 0.0
    %329 = vmatpush1.msra.mxu0 %v90
    %330 = vmatprep.subr.mxu0 0.0
    %331 = vmatpush1.msra.mxu0 %v91
    %332 = vmatprep.subr.mxu0 0.0
    %333 = vmatpush1.msra.mxu0 %v92
    %334 = vmatprep.mubr.f32.mxu0 %v175
    %335 = vmatmul.mubr.f32.gmra.mrb[0].mxu0 %v174
    %v336 = vpop.f32.mrb[0].mxu0
    %v337 = vadd.f32 %v267, %v336
    %v338 = vpop.f32.mrb[0].mxu0
    %339 = vdwg.mxu0
    %340 = vmatprep.subr.mxu0 0.0
    %341 = vmatpush1.msra.mxu0 %v93
    %342 = vmatprep.subr.mxu0 0.0
    %343 = vmatpush1.msra.mxu0 %v94
    %344 = vmatprep.subr.mxu0 0.0
    %345 = vmatpush1.msra.mxu0 %v95
    %346 = vmatprep.subr.mxu0 0.0
    %347 = vmatpush1.msra.mxu0 %v96
    %348 = vmatprep.subr.mxu0 0.0
    %349 = vmatpush1.msra.mxu0 %v97
    %350 = vmatprep.subr.mxu0 0.0
    %351 = vmatpush1.msra.mxu0 %v98
    %352 = vmatprep.subr.mxu0 0.0
    %353 = vmatpush1.msra.mxu0 %v99
    %354 = vmatprep.subr.mxu0 0.0
    %355 = vmatpush1.msra.mxu0 %v100
    %356 = vmatprep.subr.mxu0 0.0
    %357 = vmatpush1.msra.mxu0 %v101
    %358 = vmatprep.subr.mxu0 0.0
    %359 = vmatpush1.msra.mxu0 %v102
    %360 = vmatprep.subr.mxu0 0.0
    %361 = vmatpush1.msra.mxu0 %v103
    %362 = vmatprep.subr.mxu0 0.0
    %363 = vmatpush1.msra.mxu0 %v104
    %364 = vmatprep.subr.mxu0 0.0
    %365 = vmatpush1.msra.mxu0 %v105
    %366 = vmatprep.subr.mxu0 0.0
    %367 = vmatpush1.msra.mxu0 %v106
    %368 = vmatprep.subr.mxu0 0.0
    %369 = vmatpush1.msra.mxu0 %v107
    %370 = vmatprep.subr.mxu0 0.0
    %371 = vmatpush1.msra.mxu0 %v108
    %372 = vmatprep.subr.mxu0 0.0
    %373 = vmatpush1.msra.mxu0 %v109
    %374 = vmatprep.subr.mxu0 0.0
    %375 = vmatpush1.msra.mxu0 %v110
    %376 = vmatprep.subr.mxu0 0.0
    %377 = vmatpush1.msra.mxu0 %v111
    %378 = vmatprep.subr.mxu0 0.0
    %379 = vmatpush1.msra.mxu0 %v112
    %380 = vmatprep.subr.mxu0 0.0
    %381 = vmatpush1.msra.mxu0 %v113
    %382 = vmatprep.subr.mxu0 0.0
    %383 = vmatpush1.msra.mxu0 %v114
    %384 = vmatprep.subr.mxu0 0.0
    %385 = vmatpush1.msra.mxu0 %v115
    %386 = vmatprep.subr.mxu0 0.0
    %387 = vmatpush1.msra.mxu0 %v116
    %388 = vmatprep.subr.mxu0 0.0
    %389 = vmatpush1.msra.mxu0 %v117
    %390 = vmatprep.subr.mxu0 0.0
    %391 = vmatpush1.msra.mxu0 %v118
    %392 = vmatprep.subr.mxu0 0.0
    %393 = vmatpush1.msra.mxu0 %v119
    %394 = vmatprep.subr.mxu0 0.0
    %395 = vmatpush1.msra.mxu0 %v120
    %396 = vmatprep.subr.mxu0 0.0
    %397 = vmatpush1.msra.mxu0 %v121
    %398 = vmatprep.subr.mxu0 0.0
    %399 = vmatpush1.msra.mxu0 %v122
    %400 = vmatprep.subr.mxu0 0.0
    %401 = vmatpush1.msra.mxu0 %v123
    %402 = vmatprep.subr.mxu0 0.0
    %403 = vmatpush1.msra.mxu0 %v124
    %404 = vmatprep.mubr.f32.mxu0 %v193
    %405 = vmatmul.mubr.f32.gmra.mrb[0].mxu0 %v192
    %v406 = vpop.f32.mrb[0].mxu0
    %v407 = vadd.f32 %v337, %v406
    %v408 = vpop.f32.mrb[0].mxu0
    %409 = vdwg.mxu0
    %v410 = vmax.f32 %v407, 0.0
    %v411 = vld [vmem:[%s3] sm:$0x1]
    %v413 = vlaneseq
    %v414 = vshrl.u32 %v413, 7
    %v415 = vsub.s32 0, %v414
    %v416 = vrot.slane %v411, %v415
    %v418 = vmul.f32 %v410, %v416
    %vm419 = vcmask 408576
    %v420 = vsel %vm419, %v418, 0.0
    %421 = vadd.xlane.f32.xlu0 %v420
    %v422 = vpop.xlane.xlu0 %421
    %s423 = sld [smem:[#allocation2]]
    %v424 = vstv %s423
    %v425 = vadd.f32 %v422, %v424
    %v426 = vxor.u32 %v425, 2147483648
    %v427 = vmul.f32 %v426, 1.442695
    %v428 = vpow.pop %v427
    %v429 = vadd.f32 %v428, 1.0
    %v430 = vrcp.pop %v429
    %v431 = vmul.f32 1.0, %v430
    %vm432 = vcmask 7168
    %433 = vst.msk [vmem:[#allocation3] sm:$0xff] %vm432, %v431
    // Predicated region
    $region22: #{tpu_custom_call.1} parent=1 // pred_check
      _
    $region23: #{tpu_custom_call.1} parent=1 // pred_check_branch
      %435 = sbr.rel (0) target = $region25
    $region24: #{tpu_custom_call.1} parent=1 // pred_region
      // Predicated region
      $region26: #{tpu_custom_call.1} parent=24 // pred_check
        _
      $region27: #{tpu_custom_call.1} parent=24 // pred_check_branch
        %437 = sbr.rel (0) target = $region29
      $region28: #{tpu_custom_call.1} parent=24 // pred_region
        // Predicated region
        $region30: #{tpu_custom_call.1} parent=28 // pred_check
          _
        $region31: #{tpu_custom_call.1} parent=28 // pred_check_branch
          %439 = sbr.rel target = $region33
        $region32: #{tpu_custom_call.1} parent=28 // pred_region
          // Predicated region
          $region45: #{tpu_custom_call.1} parent=32 // pred_check
            _
          $region46: #{tpu_custom_call.1} parent=32 // pred_check_branch
            %454 = sbr.rel (0) target = $region48
          $region47: #{tpu_custom_call.1} parent=32 // pred_region
            loop: start=0, step=1, limit=1
            $region49: #{tpu_custom_call.1} parent=47 // loop_pre_header
              _
            $region50: #{tpu_custom_call.1} parent=47 // loop_header
              %s457 = sphi 0, %s461
              %p458 = scmp.ge.s32.totalorder %s457, 1
              %s462 = sphi [#allocation3], [#allocation3]
              %s463 = sphi %s5, %s5
            $region51: #{tpu_custom_call.1} parent=47 // loop_header_branch
              %460 = sbr.rel (%p458) target = $region55
            $region52: #{tpu_custom_call.1} parent=47 // loop_body
              %v464 = vld [vmem:[%s462] sm:$0x3]
              %465 = vst [vmem:[%s463] sm:$0x3] %v464
            $region53: #{tpu_custom_call.1} parent=47 // loop_footer
              %s461 = sadd.s32 1, %s457
            $region54: #{tpu_custom_call.1} parent=47 // loop_footer_branch
              %456 = sbr.rel target = $region50
            $region55: #{tpu_custom_call.1} parent=47 // loop_exit
              _
          $region48: #{tpu_custom_call.1} parent=32 // pred_fallthru
            _
        $region33: #{tpu_custom_call.1} parent=28 // pred_fallthru
          _
        // Predicated region
        $region34: #{tpu_custom_call.1} parent=28 // pred_check
          _
        $region35: #{tpu_custom_call.1} parent=28 // pred_check_branch
          %441 = sbr.rel (0) target = $region37
        $region36: #{tpu_custom_call.1} parent=28 // pred_region
          loop: start=0, step=1, limit=1
          $region38: #{tpu_custom_call.1} parent=36 // loop_pre_header
            _
          $region39: #{tpu_custom_call.1} parent=36 // loop_header
            %s444 = sphi 0, %s448
            %p445 = scmp.ge.s32.totalorder %s444, 1
            %s449 = sphi [#allocation3], [#allocation3]
            %s450 = sphi %s5, %s5
          $region40: #{tpu_custom_call.1} parent=36 // loop_header_branch
            %447 = sbr.rel (%p445) target = $region44
          $region41: #{tpu_custom_call.1} parent=36 // loop_body
            %v451 = vld [vmem:[%s449] sm:$0x3]
            %452 = vst [vmem:[%s450] sm:$0x3] %v451
          $region42: #{tpu_custom_call.1} parent=36 // loop_footer
            %s448 = sadd.s32 1, %s444
          $region43: #{tpu_custom_call.1} parent=36 // loop_footer_branch
            %443 = sbr.rel target = $region39
          $region44: #{tpu_custom_call.1} parent=36 // loop_exit
            _
        $region37: #{tpu_custom_call.1} parent=28 // pred_fallthru
          _
      $region29: #{tpu_custom_call.1} parent=24 // pred_fallthru
        _
      %466 = vnop
    $region25: #{tpu_custom_call.1} parent=1 // pred_fallthru
      _
    // Predicated region
    $region56: #{tpu_custom_call.1} parent=1 // pred_check
      _
    $region57: #{tpu_custom_call.1} parent=1 // pred_check_branch
      %468 = sbr.rel (0) target = $region59
    $region58: #{tpu_custom_call.1} parent=1 // pred_region
      _
    $region59: #{tpu_custom_call.1} parent=1 // pred_fallthru
      _

</llo_original>
